<compile_context>
chip_gen: v7x
topology: tpu7x:2x2x1
jax: 0.10.0
libtpu: 0.0.40
codegen_flags: <defaults>
</compile_context>

<pallas_src>
import functools

import jax
import jax.numpy as jnp
from jax import lax
from jax.experimental import pallas as pl
from jax.experimental.pallas import tpu as pltpu

LANE = 128


def _round_up(x, m):
    return ((x + m - 1) // m) * m


def channel_attention_kernel(x_ref, w1_ref, w2_ref, o_ref, sum_acc, max_acc,
                             *, hw, tile_hw, inv_hw, needs_mask):
    # x_ref   : (B_TILE, C, TILE_HW)  current spatial tile (tail may over-run)
    # w1_ref  : (C, C)                first 1x1-conv weight  (C_out, C_in)
    # w2_ref  : (C, C)                second 1x1-conv weight (C_out, C_in)
    # o_ref   : (B_TILE, 1, C)        sigmoid(fc(avg) + fc(max))
    # sum_acc : (B_TILE, C) f32 VMEM  running spatial sum
    # max_acc : (B_TILE, C) f32 VMEM  running spatial max
    s = pl.program_id(1)
    num_s = pl.num_programs(1)

    @pl.when(s == 0)
    def _init():
        sum_acc[...] = jnp.zeros_like(sum_acc)
        max_acc[...] = jnp.full_like(max_acc, -jnp.inf)

    def _accumulate(mask_tail):
        x = x_ref[...].astype(jnp.float32)          # (B_TILE, C, TILE_HW)
        if mask_tail:
            # Lane-only iota, broadcast in the compare (no full-block iota).
            col = lax.broadcasted_iota(jnp.int32, (1, 1, tile_hw), 2) + s * tile_hw
            valid = col < hw
            x_sum = jnp.where(valid, x, 0.0)
            x_max = jnp.where(valid, x, -jnp.inf)
        else:
            x_sum = x
            x_max = x
        sum_acc[...] = sum_acc[...] + jnp.sum(x_sum, axis=-1)
        max_acc[...] = jnp.maximum(max_acc[...], jnp.max(x_max, axis=-1))

    if needs_mask:
        # Only the tail spatial tile can over-run the (unpadded) input.
        @pl.when(s < num_s - 1)
        def _full():
            _accumulate(mask_tail=False)

        @pl.when(s == num_s - 1)
        def _tail():
            _accumulate(mask_tail=True)
    else:
        _accumulate(mask_tail=False)

    @pl.when(s == num_s - 1)
    def _finalize():
        avg_p = sum_acc[...] * inv_hw               # (B_TILE, C)
        max_p = max_acc[...]                        # (B_TILE, C)
        # Fuse both fc() branches into a single pair of matmuls.
        p = jnp.concatenate([avg_p, max_p], axis=0)  # (2*B_TILE, C)

        w1 = w1_ref[...]
        w2 = w2_ref[...]
        if w1.dtype != jnp.float32:
            w1 = w1.astype(jnp.float32)
        if w2.dtype != jnp.float32:
            w2 = w2.astype(jnp.float32)

        # 1x1 conv on a (N, C, 1, 1) tensor == p @ W^T; contract p's channel
        # dim against the weight's input-channel dim (no in-kernel transpose).
        dnums = (((1,), (1,)), ((), ()))
        h = lax.dot_general(p, w1, dnums, preferred_element_type=jnp.float32)
        h = jnp.maximum(h, 0.0)                      # ReLU
        y = lax.dot_general(h, w2, dnums, preferred_element_type=jnp.float32)

        bt = avg_p.shape[0]
        out = jax.nn.sigmoid(y[:bt] + y[bt:])        # (B_TILE, C)
        o_ref[...] = out[:, None, :].astype(o_ref.dtype)


def channel_attention(x, w1, w2, *, max_b_tile=8, target_step_bytes=8 << 20,
                      max_tile_hw=None):
    """x: (B, C, H, W) NCHW; w1, w2: (C, C). Returns (B, C, 1, 1)."""
    B, C, H, W = x.shape
    HW = H * W
    itemsize = jnp.dtype(x.dtype).itemsize
    w_itemsize = jnp.dtype(w1.dtype).itemsize

    # Per-TensorCore VMEM capacity for this generation (64 MiB on v7x,
    # 128 MiB on v5e/v6e). Conservative 64 MiB fallback if the query fails.
    try:
        vmem_cap = int(pltpu.get_tpu_info().vmem_capacity_bytes)
    except Exception:
        vmem_cap = 64 << 20
    vmem_budget = max(min(vmem_cap - (8 << 20), 120 << 20), 32 << 20)

    # Batch tile: keep >= 2 batch tiles whenever B > 1 so megacore parts (v7x)
    # split the "parallel" batch axis across both TensorCores. The spatial
    # tile below grows to keep per-step bytes constant, so single-TC chips
    # (v5e/v6e) lose nothing.
    if B > 1:
        b_tile = max(1, min(B, max_b_tile, pl.cdiv(B, 2)))
    else:
        b_tile = 1

    # Spatial tile sized from a per-step byte budget, multiple of 128 lanes,
    # clamped so double-buffered input tiles + resident weights + scratch fit
    # inside VMEM with headroom.
    lane_col_bytes = b_tile * C * itemsize            # bytes per spatial lane
    weights_bytes = 2 * 2 * C * C * w_itemsize        # w1, w2 double-buffered
    scratch_bytes = 2 * b_tile * C * 4
    avail_x_bytes = max(vmem_budget - weights_bytes - scratch_bytes - (2 << 20),
                        2 * 2 * LANE * lane_col_bytes)
    tile_hw = min(target_step_bytes // lane_col_bytes,
                  avail_x_bytes // (2 * lane_col_bytes))
    tile_hw = max(LANE, (tile_hw // LANE) * LANE)
    if max_tile_hw is not None:
        tile_hw = max(LANE, min(tile_hw, _round_up(max_tile_hw, LANE)))
    if tile_hw >= HW:
        tile_hw = HW                   # single full-extent spatial block
    needs_mask = (HW % tile_hw) != 0   # only the tail tile over-runs

    grid = (pl.cdiv(B, b_tile), pl.cdiv(HW, tile_hw))

    # Free reshape (collapses contiguous trailing dims) — no HBM copy, and no
    # jnp.pad: partial trailing blocks are handled by Pallas + in-kernel mask.
    x_flat = x.reshape(B, C, HW)

    kernel = functools.partial(
        channel_attention_kernel,
        hw=HW, tile_hw=tile_hw, inv_hw=1.0 / HW, needs_mask=needs_mask)

    x_tile_bytes = b_tile * C * tile_hw * itemsize
    vmem_limit = int(min(max(2 * x_tile_bytes + weights_bytes + scratch_bytes
                             + (4 << 20), 32 << 20), vmem_budget))

    cost = pl.CostEstimate(
        flops=2 * B * C * HW + 2 * 2 * (2 * B) * C * C,
        transcendentals=B * C,
        bytes_accessed=(B * C * HW * itemsize
                        + 2 * C * C * w_itemsize
                        + B * C * itemsize),
    )

    out = pl.pallas_call(
        kernel,
        out_shape=jax.ShapeDtypeStruct((B, 1, C), x.dtype),
        grid_spec=pltpu.PrefetchScalarGridSpec(
            num_scalar_prefetch=0,
            grid=grid,
            in_specs=[
                pl.BlockSpec((b_tile, C, tile_hw), lambda b, s: (b, 0, s)),
                pl.BlockSpec((C, C), lambda b, s: (0, 0)),
                pl.BlockSpec((C, C), lambda b, s: (0, 0)),
            ],
            out_specs=pl.BlockSpec((b_tile, 1, C), lambda b, s: (b, 0, 0)),
            scratch_shapes=[
                pltpu.VMEM((b_tile, C), jnp.float32),   # running sum
                pltpu.VMEM((b_tile, C), jnp.float32),   # running max
            ],
        ),
        compiler_params=pltpu.CompilerParams(
            dimension_semantics=("parallel", "arbitrary"),
            vmem_limit_bytes=vmem_limit,
        ),
        cost_estimate=cost,
    )(x_flat, w1, w2)

    return out.reshape(B, C, 1, 1)


def _reference(x, w1, w2):
    # Pure-JAX reference mirroring the PyTorch module.
    avg_p = jnp.mean(x.astype(jnp.float32), axis=(2, 3))   # (B, C)
    max_p = jnp.max(x.astype(jnp.float32), axis=(2, 3))    # (B, C)

    def fc(p):
        h = jnp.maximum(p @ w1.T, 0.0)
        return h @ w2.T

    return jax.nn.sigmoid(fc(avg_p) + fc(max_p))[:, :, None, None]


if __name__ == "__main__":
    key = jax.random.PRNGKey(0)
    kx, k1, k2, kx2, kx3 = jax.random.split(key, 5)

    # Test 1: small, 128-divisible spatial extent (unmasked path).
    B, C, H, W = 2, 4, 16, 16
    x = jax.random.normal(kx, (B, C, H, W), dtype=jnp.float32)
    # 1x1-conv weights, shape (C_out, C_in) (PyTorch stores (C, C, 1, 1)).
    w1 = jax.random.normal(k1, (C, C), dtype=jnp.float32) * (1.0 / (C ** 0.5))
    w2 = jax.random.normal(k2, (C, C), dtype=jnp.float32) * (1.0 / (C ** 0.5))

    out = jax.block_until_ready(channel_attention(x, w1, w2))
    ref = _reference(x, w1, w2)
    assert out.shape == (B, C, 1, 1)
    assert jnp.allclose(out, ref, atol=1e-5, rtol=1e-5), "mismatch vs reference"

    # Test 2: HW not a multiple of 128 -> single full-extent spatial block.
    x2 = jax.random.normal(kx2, (B, C, 9, 7), dtype=jnp.float32)
    out2 = jax.block_until_ready(channel_attention(x2, w1, w2))
    ref2 = _reference(x2, w1, w2)
    assert jnp.allclose(out2, ref2, atol=1e-5, rtol=1e-5), "mismatch (full-extent)"

    # Test 3: forced small spatial tile -> multiple spatial tiles with a
    # partial masked tail, plus a partial trailing batch tile (B=3, b_tile=2),
    # all without any wrapper-side padding.
    x3 = jax.random.normal(kx3, (3, C, 13, 11), dtype=jnp.float32)
    out3 = jax.block_until_ready(channel_attention(x3, w1, w2, max_tile_hw=128))
    ref3 = _reference(x3, w1, w2)
    assert out3.shape == (3, C, 1, 1)
    assert jnp.allclose(out3, ref3, atol=1e-5, rtol=1e-5), "mismatch (masked tail)"

    print("KERNEL_OK")
</pallas_src>

<mosaic_0001>
module attributes {stable_mosaic.version = 11 : i64} {
  func.func @channel_attention_kernel(%arg0: i32, %arg1: i32, %arg2: memref<1x4x256xf32, #tpu.memory_space<vmem>>, %arg3: memref<4x4xf32, #tpu.memory_space<vmem>>, %arg4: memref<4x4xf32, #tpu.memory_space<vmem>>, %arg5: memref<1x1x4xf32, #tpu.memory_space<vmem>>, %arg6: memref<1x4xf32, #tpu.memory_space<vmem>>, %arg7: memref<1x4xf32, #tpu.memory_space<vmem>>) attributes {dimension_semantics = [#tpu.dimension_semantics<parallel>, #tpu.dimension_semantics<arbitrary>], iteration_bounds = array<i64: 2, 1>, scalar_prefetch = 0 : i64, scratch_operands = 2 : i64, tpu.core_type = #tpu.core_type<tc>, window_params = [{transform_indices = @transform_0, window_bounds = array<i64: 1, 4, 256>}, {pipeline_mode = #tpu.pipeline_mode<synchronous>, transform_indices = @transform_1, window_bounds = array<i64: 4, 4>}, {pipeline_mode = #tpu.pipeline_mode<synchronous>, transform_indices = @transform_2, window_bounds = array<i64: 4, 4>}, {transform_indices = @transform_3, window_bounds = array<i64: 1, 1, 4>}]} {
    %c0_i32 = arith.constant 0 : i32
    %0 = arith.cmpi eq, %arg1, %c0_i32 : i32
    %1 = arith.extui %0 : i1 to i32
    %c0_i32_0 = arith.constant 0 : i32
    %2 = arith.cmpi ne, %1, %c0_i32_0 : i32
    scf.if %2 {
      %cst_14 = arith.constant 0.000000e+00 : f32
      %15 = vector.broadcast %cst_14 : f32 to vector<1x4xf32>
      %c0_15 = arith.constant 0 : index
      %c0_16 = arith.constant 0 : index
      %16 = vector.load %arg6[%c0_15, %c0_16] : memref<1x4xf32, #tpu.memory_space<vmem>>, vector<1x4xf32>
      tpu.vector_store %arg6[%c0_15, %c0_16], %15 {strides = array<i32>} : memref<1x4xf32, #tpu.memory_space<vmem>>, vector<1x4xf32>,
      %cst_17 = arith.constant 0xFF800000 : f32
      %17 = vector.broadcast %cst_17 : f32 to vector<1x4xf32>
      %c0_18 = arith.constant 0 : index
      %c0_19 = arith.constant 0 : index
      %18 = vector.load %arg7[%c0_18, %c0_19] : memref<1x4xf32, #tpu.memory_space<vmem>>, vector<1x4xf32>
      tpu.vector_store %arg7[%c0_18, %c0_19], %17 {strides = array<i32>} : memref<1x4xf32, #tpu.memory_space<vmem>>, vector<1x4xf32>,
    } else {
    }
    %c0 = arith.constant 0 : index
    %c0_1 = arith.constant 0 : index
    %c0_2 = arith.constant 0 : index
    %3 = vector.load %arg2[%c0, %c0_1, %c0_2] : memref<1x4x256xf32, #tpu.memory_space<vmem>>, vector<1x4x256xf32>
    %c0_3 = arith.constant 0 : index
    %c0_4 = arith.constant 0 : index
    %4 = vector.load %arg6[%c0_3, %c0_4] : memref<1x4xf32, #tpu.memory_space<vmem>>, vector<1x4xf32>
    %cst = arith.constant dense<0.000000e+00> : vector<1x4xf32>
    %5 = vector.multi_reduction <add>, %3, %cst [2] : vector<1x4x256xf32> to vector<1x4xf32>
    %6 = arith.addf %4, %5 : vector<1x4xf32>
    %c0_5 = arith.constant 0 : index
    %c0_6 = arith.constant 0 : index
    %7 = vector.load %arg6[%c0_5, %c0_6] : memref<1x4xf32, #tpu.memory_space<vmem>>, vector<1x4xf32>
    tpu.vector_store %arg6[%c0_5, %c0_6], %6 {strides = array<i32>} : memref<1x4xf32, #tpu.memory_space<vmem>>, vector<1x4xf32>,
    %c0_7 = arith.constant 0 : index
    %c0_8 = arith.constant 0 : index
    %8 = vector.load %arg7[%c0_7, %c0_8] : memref<1x4xf32, #tpu.memory_space<vmem>>, vector<1x4xf32>
    %cst_9 = arith.constant dense<0xFF800000> : vector<1x4xf32>
    %9 = vector.multi_reduction <maximumf>, %3, %cst_9 [2] : vector<1x4x256xf32> to vector<1x4xf32>
    %10 = arith.maximumf %8, %9 : vector<1x4xf32>
    %c0_10 = arith.constant 0 : index
    %c0_11 = arith.constant 0 : index
    %11 = vector.load %arg7[%c0_10, %c0_11] : memref<1x4xf32, #tpu.memory_space<vmem>>, vector<1x4xf32>
    tpu.vector_store %arg7[%c0_10, %c0_11], %10 {strides = array<i32>} : memref<1x4xf32, #tpu.memory_space<vmem>>, vector<1x4xf32>,
    %c0_i32_12 = arith.constant 0 : i32
    %12 = arith.cmpi eq, %arg1, %c0_i32_12 : i32
    %13 = arith.extui %12 : i1 to i32
    %c0_i32_13 = arith.constant 0 : i32
    %14 = arith.cmpi ne, %13, %c0_i32_13 : i32
    scf.if %14 {
      %c0_14 = arith.constant 0 : index
      %c0_15 = arith.constant 0 : index
      %15 = vector.load %arg6[%c0_14, %c0_15] : memref<1x4xf32, #tpu.memory_space<vmem>>, vector<1x4xf32>
      %cst_16 = arith.constant 3.906250e-03 : f32
      %16 = vector.broadcast %cst_16 : f32 to vector<1x4xf32>
      %17 = arith.mulf %15, %16 : vector<1x4xf32>
      %c0_17 = arith.constant 0 : index
      %c0_18 = arith.constant 0 : index
      %18 = vector.load %arg7[%c0_17, %c0_18] : memref<1x4xf32, #tpu.memory_space<vmem>>, vector<1x4xf32>
      %19 = tpu.concatenate %17, %18 in 0 : vector<1x4xf32>, vector<1x4xf32> -> vector<2x4xf32>
      %c0_19 = arith.constant 0 : index
      %c0_20 = arith.constant 0 : index
      %20 = vector.load %arg3[%c0_19, %c0_20] : memref<4x4xf32, #tpu.memory_space<vmem>>, vector<4x4xf32>
      %c0_21 = arith.constant 0 : index
      %c0_22 = arith.constant 0 : index
      %21 = vector.load %arg4[%c0_21, %c0_22] : memref<4x4xf32, #tpu.memory_space<vmem>>, vector<4x4xf32>
      %cst_23 = arith.constant dense<0.000000e+00> : vector<2x4xf32>
      %22 = tpu.matmul %19, %20, %cst_23 {dimension_numbers = #tpu.dot_dimension_numbers<[1], [1], [0], [0], [0, 0, 1, 0], [], []>} : vector<2x4xf32>, vector<4x4xf32>, vector<2x4xf32> -> vector<2x4xf32>
      %cst_24 = arith.constant 0.000000e+00 : f32
      %23 = vector.broadcast %cst_24 : f32 to vector<2x4xf32>
      %24 = arith.maximumf %22, %23 : vector<2x4xf32>
      %cst_25 = arith.constant dense<0.000000e+00> : vector<2x4xf32>
      %25 = tpu.matmul %24, %21, %cst_25 {dimension_numbers = #tpu.dot_dimension_numbers<[1], [1], [0], [0], [0, 0, 1, 0], [], []>} : vector<2x4xf32>, vector<4x4xf32>, vector<2x4xf32> -> vector<2x4xf32>
      %26 = vector.extract_strided_slice %25 {offsets = [0, 0], sizes = [1, 4], strides = [1, 1]} : vector<2x4xf32> to vector<1x4xf32>
      %27 = vector.extract_strided_slice %25 {offsets = [1, 0], sizes = [1, 4], strides = [1, 1]} : vector<2x4xf32> to vector<1x4xf32>
      %28 = arith.addf %26, %27 : vector<1x4xf32>
      %29 = arith.negf %28 : vector<1x4xf32>
      %30 = math.exp %29 : vector<1x4xf32>
      %cst_26 = arith.constant 1.000000e+00 : f32
      %31 = vector.broadcast %cst_26 : f32 to vector<1x4xf32>
      %32 = arith.addf %31, %30 : vector<1x4xf32>
      %33 = arith.divf %31, %32 : vector<1x4xf32>
      %34 = vector.shape_cast %33 : vector<1x4xf32> to vector<1x1x4xf32>
      %c0_27 = arith.constant 0 : index
      %c0_28 = arith.constant 0 : index
      %c0_29 = arith.constant 0 : index
      %35 = vector.load %arg5[%c0_27, %c0_28, %c0_29] : memref<1x1x4xf32, #tpu.memory_space<vmem>>, vector<1x1x4xf32>
      tpu.vector_store %arg5[%c0_27, %c0_28, %c0_29], %34 {strides = array<i32>} : memref<1x1x4xf32, #tpu.memory_space<vmem>>, vector<1x1x4xf32>,
    } else {
    }
    return
  }
  func.func @transform_0(%arg0: i32, %arg1: i32) -> (i32, i32, i32) {
    %c0_i32 = arith.constant 0 : i32
    %c0_i32_0 = arith.constant 0 : i32
    return %arg0, %c0_i32, %arg1 : i32, i32, i32
  }
  func.func @transform_1(%arg0: i32, %arg1: i32) -> (i32, i32) {
    %c0_i32 = arith.constant 0 : i32
    %c0_i32_0 = arith.constant 0 : i32
    %c0_i32_1 = arith.constant 0 : i32
    return %c0_i32, %c0_i32_0 : i32, i32
  }
  func.func @transform_2(%arg0: i32, %arg1: i32) -> (i32, i32) {
    %c0_i32 = arith.constant 0 : i32
    %c0_i32_0 = arith.constant 0 : i32
    %c0_i32_1 = arith.constant 0 : i32
    return %c0_i32, %c0_i32_0 : i32, i32
  }
  func.func @transform_3(%arg0: i32, %arg1: i32) -> (i32, i32, i32) {
    %c0_i32 = arith.constant 0 : i32
    %c0_i32_0 = arith.constant 0 : i32
    %c0_i32_1 = arith.constant 0 : i32
    return %arg0, %c0_i32, %c0_i32_0 : i32, i32, i32
  }
}

</mosaic_0001>

<llo_original>
// kernel: tpu_custom_call.1
$region0: #{tpu_custom_call.1}
  #allocation0 [shape = 'u32[]', space=smem, size = 0x4, offset = 0x4, fixed_abs, tag = 'smem constant byte address 0x4 - core index']
  #allocation1 [shape = 'u32[144,128]{1,0:T(1,128)}', space=vmem, size = 0x12000, scoped, tag = 'internal scratch']
  #allocation2 [shape = 'f32[1,4]{1,0:T(1,128)}', space=vmem, size = 0x200, scoped, tag = 'scratch operand']
  #allocation3 [shape = 'f32[1,4]{1,0:T(1,128)}', space=vmem, size = 0x200, scoped, tag = 'scratch operand']
  %s0 = inlined_call_operand.hbm [shape: f32[2,4,256], index: 0, kind: input, shape index: {}]
  %s1 = inlined_call_operand.hbm [shape: f32[4,4], index: 1, kind: input, shape index: {}]
  %s2 = inlined_call_operand.vmem [shape: f32[4,4], index: 2, kind: input, shape index: {}]
  %s3 = inlined_call_operand.hbm [shape: f32[2,1,4], index: 3, kind: output, shape index: {}]
  %s4 = sld [smem:[#allocation0]]
  $region61: #{tpu_custom_call.1} parent=0
    _
  %s6 = ssub.s32 1, %s4
  %s7 = scalar_select 0, %s6, %s4
  $region1: #{tpu_custom_call.1} parent=0
    #allocation4 [shape = 'u8[8192]{0}', space=vmem, size = 0x2000, scoped, tag = 'input window, operand 0']
    #allocation5 [shape = 's32[2]{0}', space=sflag, size = 0x8, scoped, tag = 'scoped memory for tpu_custom_call.1']
    #allocation6 [shape = 's32[2]{0}', space=sflag, size = 0x8, scoped, tag = 'scoped memory for tpu_custom_call.1']
    #allocation7 [shape = 'u8[2048]{0}', space=vmem, size = 0x800, scoped, tag = 'input window, operand 1, single buffered']
    #allocation8 [shape = 's32[1]{0}', space=sflag, size = 0x4, scoped, tag = 'scoped memory for tpu_custom_call.1']
    #allocation9 [shape = 'u8[1024]{0}', space=vmem, size = 0x400, scoped, tag = 'output window, operand 0']
    %8 = vsyncpa [#allocation5], 0
    %s9 = scalar_lea.sflag [#allocation5], 1
    %10 = vsyncpa %s9, 0
    %11 = vsyncpa [#allocation8], 0
    %12 = vsyncpa [#allocation6], 0
    %s13 = scalar_lea.sflag [#allocation6], 1
    %14 = vsyncpa %s13, 0
    loop: start=0, step=1, limit=4
    $region2: #{tpu_custom_call.1} parent=1 // loop_pre_header
      _
    $region3: #{tpu_custom_call.1} parent=1 // loop_header
      %s16 = sphi 0, %s20
      %p17 = scmp.ge.s32.totalorder %s16, 4
      %s23 = sphi 0, %s35
      %s24 = sphi 0, %s31
      %s25 = sphi 0, %s23
      %s26 = sphi 0, %s24
      %s27 = sphi 0, %s25
      %s28 = sphi 0, %s26
      %s40 = sphi 0, %s42
      %s43 = sphi 0, %s40
      %s44 = sphi 0, %s43
      %s60 = sphi 0, %s44
      %s64 = sphi 0, %s64
      %s66 = sphi 0, %s64
      %s67 = sphi 0, %s66
      %s81 = sphi 0, %s67
      %s85 = sphi 0, %s85
      %s87 = sphi 0, %s85
      %s88 = sphi 0, %s87
      %s102 = sphi 0, %s88
      %s108 = sphi 0, %s110
      %s111 = sphi 0, %s108
      %s112 = sphi 0, %s111
      %s128 = sphi 0, %s112
    $region4: #{tpu_custom_call.1} parent=1 // loop_header_branch
      %19 = sbr.rel (%p17) target = $region8
    $region5: #{tpu_custom_call.1} parent=1 // loop_body
      %s21 = ssub.s32 %s16, 1
      %s22 = ssub.s32 %s16, 2
      %s29 = sadd.s32 1, %s24
      %p30 = scmp.ge.s32.totalorder %s29, 1
      %s31 = scalar_select %p30, 0, %s29
      %s32 = sadd.s32 1, %s23
      %s33 = scalar_select %p30, %s32, %s23
      %p34 = scmp.ge.s32.totalorder %s33, 2
      %s35 = scalar_select %p34, 0, %s33
      %s36 = ssub.s32 %s23, %s35
      %s37 = ssub.s32 %s24, %s31
      %s38 = sor.u32 %s36, %s37
      %p39 = scmp.eq.s32.totalorder %s38, 0
      %s41 = sadd.s32 %s40, 1
      %s42 = scalar_select %p39, %s40, %s41
      %p45 = pneg %p39
      %p46 = scmp.eq.s32.totalorder %s16, 1
      %p47 = por %p45, %p46
      %p48 = scmp.ne.s32.totalorder %s40, %s43
      %p49 = scmp.eq.s32.totalorder %s16, 0
      %p50 = por %p48, %p49
      %p51 = scmp.ne.s32.totalorder %s40, %s43
      %p52 = scmp.eq.s32.totalorder %s21, 1
      %p53 = por %p51, %p52
      %p54 = scmp.ne.s32.totalorder %s43, %s44
      %p55 = scmp.eq.s32.totalorder %s21, 0
      %p56 = por %p54, %p55
      %p57 = scmp.ne.s32.totalorder %s43, %s44
      %p58 = scmp.eq.s32.totalorder %s22, 1
      %p59 = por %p57, %p58
      %p61 = scmp.ne.s32.totalorder %s44, %s60
      %p62 = scmp.eq.s32.totalorder %s22, 0
      %p63 = por %p61, %p62
      %s65 = sadd.s32 %s64, 1
      %p68 = scmp.eq.s32.totalorder %s16, 1
      %p69 = scmp.ne.s32.totalorder %s64, %s66
      %p70 = scmp.eq.s32.totalorder %s16, 0
      %p71 = por %p69, %p70
      %p72 = scmp.ne.s32.totalorder %s64, %s66
      %p73 = scmp.eq.s32.totalorder %s21, 1
      %p74 = por %p72, %p73
      %p75 = scmp.ne.s32.totalorder %s66, %s67
      %p76 = scmp.eq.s32.totalorder %s21, 0
      %p77 = por %p75, %p76
      %p78 = scmp.ne.s32.totalorder %s66, %s67
      %p79 = scmp.eq.s32.totalorder %s22, 1
      %p80 = por %p78, %p79
      %p82 = scmp.ne.s32.totalorder %s67, %s81
      %p83 = scmp.eq.s32.totalorder %s22, 0
      %p84 = por %p82, %p83
      %s86 = sadd.s32 %s85, 1
      %p89 = scmp.eq.s32.totalorder %s16, 1
      %p90 = scmp.ne.s32.totalorder %s85, %s87
      %p91 = scmp.eq.s32.totalorder %s16, 0
      %p92 = por %p90, %p91
      %p93 = scmp.ne.s32.totalorder %s85, %s87
      %p94 = scmp.eq.s32.totalorder %s21, 1
      %p95 = por %p93, %p94
      %p96 = scmp.ne.s32.totalorder %s87, %s88
      %p97 = scmp.eq.s32.totalorder %s21, 0
      %p98 = por %p96, %p97
      %p99 = scmp.ne.s32.totalorder %s87, %s88
      %p100 = scmp.eq.s32.totalorder %s22, 1
      %p101 = por %p99, %p100
      %p103 = scmp.ne.s32.totalorder %s88, %s102
      %p104 = scmp.eq.s32.totalorder %s22, 0
      %p105 = por %p103, %p104
      %s106 = ssub.s32 %s23, %s35
      %p107 = scmp.eq.s32.totalorder %s106, 0
      %s109 = sadd.s32 %s108, 1
      %s110 = scalar_select %p107, %s108, %s109
      %p113 = pneg %p107
      %p114 = scmp.eq.s32.totalorder %s16, 1
      %p115 = por %p113, %p114
      %p116 = scmp.ne.s32.totalorder %s108, %s111
      %p117 = scmp.eq.s32.totalorder %s16, 0
      %p118 = por %p116, %p117
      %p119 = scmp.ne.s32.totalorder %s108, %s111
      %p120 = scmp.eq.s32.totalorder %s21, 1
      %p121 = por %p119, %p120
      %p122 = scmp.ne.s32.totalorder %s111, %s112
      %p123 = scmp.eq.s32.totalorder %s21, 0
      %p124 = por %p122, %p123
      %p125 = scmp.ne.s32.totalorder %s111, %s112
      %p126 = scmp.eq.s32.totalorder %s22, 1
      %p127 = por %p125, %p126
      %p129 = scmp.ne.s32.totalorder %s112, %s128
      %p130 = scmp.eq.s32.totalorder %s22, 0
      %p131 = por %p129, %p130
      %p132 = scmp.le.s32.totalorder 1, %s16
      %p133 = scmp.lt.s32.totalorder %s16, 3
      %p134 = pnand %p132, %p133
      %p135 = pneg %p134
      // Predicated region
      $region9: #{tpu_custom_call.1} parent=5 // pred_check
        _
      $region10: #{tpu_custom_call.1} parent=5 // pred_check_branch
        %137 = sbr.rel (%p134) target = $region12
      $region11: #{tpu_custom_call.1} parent=5 // pred_region
        %s138 = ssub.s32 %s16, 1
        // Predicated region
        $region13: #{tpu_custom_call.1} parent=11 // pred_check
          %p139 = pneg %p77
        $region14: #{tpu_custom_call.1} parent=11 // pred_check_branch
          %141 = sbr.rel (%p139) target = $region16
        $region15: #{tpu_custom_call.1} parent=11 // pred_region
          %s143 = ssub.s32 64, 64
          %144 = vsyncadd [#allocation8], %s143
          %s146 = sshll.u32 [#allocation7], 4
          %s147 = int_to_ptr.vmem [resolvable:$true] %s146
          %149 = dma.hbm_to_vmem [thread:$0]  %s1, 64, %s147, [#allocation8]
        $region16: #{tpu_custom_call.1} parent=11 // pred_fallthru
          _
        // Predicated region
        $region17: #{tpu_custom_call.1} parent=11 // pred_check
          %p150 = pneg %p98
        $region18: #{tpu_custom_call.1} parent=11 // pred_check_branch
          %152 = sbr.rel (%p150) target = $region20
        $region19: #{tpu_custom_call.1} parent=11 // pred_region
          _
        $region20: #{tpu_custom_call.1} parent=11 // pred_fallthru
          _
      $region12: #{tpu_custom_call.1} parent=5 // pred_fallthru
        _
      %p153 = scmp.lt.s32.totalorder %s16, 2
      // Predicated region
      $region21: #{tpu_custom_call.1} parent=5 // pred_check
        %p154 = pneg %p153
      $region22: #{tpu_custom_call.1} parent=5 // pred_check_branch
        %156 = sbr.rel (%p154) target = $region24
      $region23: #{tpu_custom_call.1} parent=5 // pred_region
        // Predicated region
        $region25: #{tpu_custom_call.1} parent=23 // pred_check
          %p157 = pneg %p50
        $region26: #{tpu_custom_call.1} parent=23 // pred_check_branch
          %159 = sbr.rel (%p157) target = $region28
        $region27: #{tpu_custom_call.1} parent=23 // pred_region
          %s160 = sand.u32 %s40, 1
          %s161 = scalar_lea.sflag [#allocation5], %s160
          %s162 = sand.u32 %s40, 1
          %s163 = smul.addr %s162, 8
          %s164 = scalar_lea.vmem [#allocation4], %s163
          %s165 = smul.u32 2, %s24
          %s167 = ssub.s32 128, 128
          %168 = vsyncadd %s161, %s167
          %s169 = smul.addr %s23, 2
          %s170 = sadd.s32 %s165, %s169
          %s171 = smul.addr %s170, 64
          %s172 = scalar_lea.hbm %s0, %s171
          %s174 = sshll.u32 %s164, 4
          %s175 = int_to_ptr.vmem [resolvable:$true] %s174
          %177 = dma.hbm_to_vmem [thread:$0]  %s172, 128, %s175, %s161
        $region28: #{tpu_custom_call.1} parent=23 // pred_fallthru
          _
      $region24: #{tpu_custom_call.1} parent=5 // pred_fallthru
        _
      %p178 = scmp.le.s32.totalorder 1, %s16
      %p179 = scmp.lt.s32.totalorder %s16, 3
      %p180 = pnand %p178, %p179
      %p181 = pneg %p180
      // Predicated region
      $region29: #{tpu_custom_call.1} parent=5 // pred_check
        _
      $region30: #{tpu_custom_call.1} parent=5 // pred_check_branch
        %183 = sbr.rel (%p180) target = $region32
      $region31: #{tpu_custom_call.1} parent=5 // pred_region
        %s184 = ssub.s32 %s16, 1
        %s185 = sand.u32 %s43, 1
        %s186 = scalar_lea.sflag [#allocation5], %s185
        %s187 = sand.u32 %s43, 1
        %s188 = smul.addr %s187, 8
        %s189 = scalar_lea.vmem [#allocation4], %s188
        // Predicated region
        $region33: #{tpu_custom_call.1} parent=31 // pred_check
          %p190 = pneg %p56
        $region34: #{tpu_custom_call.1} parent=31 // pred_check_branch
          %192 = sbr.rel (%p190) target = $region36
        $region35: #{tpu_custom_call.1} parent=31 // pred_region
          %193 = dma.done %s186, 128
        $region36: #{tpu_custom_call.1} parent=31 // pred_fallthru
          _
        // Predicated region
        $region37: #{tpu_custom_call.1} parent=31 // pred_check
          %p194 = pneg %p77
        $region38: #{tpu_custom_call.1} parent=31 // pred_check_branch
          %196 = sbr.rel (%p194) target = $region40
        $region39: #{tpu_custom_call.1} parent=31 // pred_region
          %197 = dma.done [#allocation8], 64
        $region40: #{tpu_custom_call.1} parent=31 // pred_fallthru
          _
        %s198 = sand.u32 %s43, 1
        %s199 = scalar_lea.sflag [#allocation5], %s198
        %s200 = sand.u32 %s43, 1
        %s201 = smul.addr %s200, 8
        %s202 = scalar_lea.vmem [#allocation4], %s201
        %p203 = pneg %p56
        %p204 = pneg %p53
        %p205 = pneg %p77
        %p206 = pneg %p74
        %p207 = pneg %p98
        %p208 = pneg %p95
        %p209 = pneg %p124
        %p210 = pneg %p121
        %s211 = sand.u32 %s111, 1
        %s212 = scalar_lea.sflag [#allocation6], %s211
        %s213 = sand.u32 %s111, 1
        %s214 = scalar_lea.vmem [#allocation9], %s213
        %s215 = smul.u32 2, %s26
        %p216 = scmp.eq.s32.totalorder %s26, 0
        // Predicated region
        $region41: #{tpu_custom_call.1} parent=31 // pred_check
          %p217 = pneg %p216
        $region42: #{tpu_custom_call.1} parent=31 // pred_check_branch
          %219 = sbr.rel (%p217) target = $region44
        $region43: #{tpu_custom_call.1} parent=31 // pred_region
          %vm220 = vcmask 24576
          %221 = vst.msk [vmem:[#allocation2] sm:$0x1] %vm220, 0.0
          %222 = vst.msk [vmem:[#allocation3] sm:$0x1] %vm220, -inf
        $region44: #{tpu_custom_call.1} parent=31 // pred_fallthru
          _
        %v223 = vld [vmem:[%s189] sm:$0xff]
        %v224 = vld [vmem:[#allocation2] sm:$0x1]
        %v226 = vcombine.high %v223, %v223
        %vm228 = vcmask 1043456
        %v229 = vsel %vm228, %v223, 0.0
        %v230 = vsel %vm228, %v226, 0.0
        %v231 = vadd.f32 %v229, %v230
        %232 = vadd.xlane.f32.xlu0 %v231
        %v233 = vpop.xlane.xlu0 %232
        %v235 = vlaneseq
        %v236 = vshrl.u32 %v235, 7
        %v237 = vsub.s32 0, %v236
        %v238 = vrot.slane %v233, %v237
        %v239 = vlaneseq
        %v240 = vshrl.u32 %v239, 7
        %v241 = vsub.s32 1, %v240
        %v242 = vrot.slane %v233, %v241
        %v243 = vlaneseq
        %v244 = vshrl.u32 %v243, 7
        %v245 = vsub.s32 2, %v244
        %v246 = vrot.slane %v233, %v245
        %v247 = vlaneseq
        %v248 = vshrl.u32 %v247, 7
        %v249 = vsub.s32 3, %v248
        %v250 = vrot.slane %v233, %v249
        %v251 = vcombine.low %v238, %v242
        %v252 = vcombine.low %v246, %v250
        %v254 = vunpack.c.l.s4 1966171168
        %v255 = vunpack.c.0.s8 %v254
        %v256 = vlaneseq
        %v257 = vshrl.u32 %v256, 7
        %v258 = vsub.s32 %v255, %v257
        %v259 = vrot.slane %v251, %v258
        %v261 = vunpack.c.l.s4 1966171168
        %v262 = vunpack.c.0.s8 %v261
        %v263 = vlaneseq
        %v264 = vshrl.u32 %v263, 7
        %v265 = vsub.s32 %v262, %v264
        %v266 = vrot.slane %v252, %v265
        %v267 = vcombine.low %v259, %v266
        %v269 = vunpack.c.l.s4 1966171168
        %v270 = vunpack.c.0.s8 %v269
        %v271 = vlaneseq
        %v272 = vshrl.u32 %v271, 7
        %v273 = vsub.s32 %v270, %v272
        %v274 = vrot.slane %v267, %v273
        %275 = vset.pattern.permute.xlu0 0
        %276 = vperm.xlu0 %275, %v274
        %v277 = vpop.permute.xlu0 %276
        %v278 = vlaneseq
        %v279 = vand.u32 %v278, 127
        %v280 = vlaneseq
        %v281 = vshrl.u32 %v280, 7
        %v282 = vsub.s32 %v279, %v281
        %v283 = vrot.slane %v277, %v282
        %v285 = vunpack.c.l.s4 1966171168
        %v286 = vunpack.c.0.s8 %v285
        %v287 = vlaneseq
        %v288 = vshrl.u32 %v287, 7
        %v289 = vsub.s32 %v286, %v288
        %v290 = vrot.slane %v283, %v289
        %v292 = vunpack.c.l.s4 1966171168
        %v293 = vunpack.c.0.s8 %v292
        %v294 = vlaneseq
        %v295 = vshrl.u32 %v294, 7
        %v296 = vsub.s32 %v293, %v295
        %v297 = vrot.slane %v290, %v296
        %v299 = vadd.f32 %v224, %v297
        %vm300 = vcmask 24576
        %301 = vst.msk [vmem:[#allocation2] sm:$0x1] %vm300, %v299
        %v302 = vld [vmem:[#allocation3] sm:$0x1]
        %v303 = vsel %vm228, %v223, -inf
        %v304 = vsel %vm228, %v226, -inf
        %v305 = vmax.f32 %v303, %v304
        %306 = vmax.xlane.f32.xlu0 %v305
        %v307 = vpop.xlane.xlu0 %306
        %v309 = vlaneseq
        %v310 = vshrl.u32 %v309, 7
        %v311 = vsub.s32 0, %v310
        %v312 = vrot.slane %v307, %v311
        %v313 = vlaneseq
        %v314 = vshrl.u32 %v313, 7
        %v315 = vsub.s32 1, %v314
        %v316 = vrot.slane %v307, %v315
        %v317 = vlaneseq
        %v318 = vshrl.u32 %v317, 7
        %v319 = vsub.s32 2, %v318
        %v320 = vrot.slane %v307, %v319
        %v321 = vlaneseq
        %v322 = vshrl.u32 %v321, 7
        %v323 = vsub.s32 3, %v322
        %v324 = vrot.slane %v307, %v323
        %v325 = vcombine.low %v312, %v316
        %v326 = vcombine.low %v320, %v324
        %v328 = vunpack.c.l.s4 1966171168
        %v329 = vunpack.c.0.s8 %v328
        %v330 = vlaneseq
        %v331 = vshrl.u32 %v330, 7
        %v332 = vsub.s32 %v329, %v331
        %v333 = vrot.slane %v325, %v332
        %v335 = vunpack.c.l.s4 1966171168
        %v336 = vunpack.c.0.s8 %v335
        %v337 = vlaneseq
        %v338 = vshrl.u32 %v337, 7
        %v339 = vsub.s32 %v336, %v338
        %v340 = vrot.slane %v326, %v339
        %v341 = vcombine.low %v333, %v340
        %v343 = vunpack.c.l.s4 1966171168
        %v344 = vunpack.c.0.s8 %v343
        %v345 = vlaneseq
        %v346 = vshrl.u32 %v345, 7
        %v347 = vsub.s32 %v344, %v346
        %v348 = vrot.slane %v341, %v347
        %349 = vset.pattern.permute.xlu0 0
        %350 = vperm.xlu0 %349, %v348
        %v351 = vpop.permute.xlu0 %350
        %v352 = vlaneseq
        %v353 = vshrl.u32 %v352, 7
        %v354 = vsub.s32 %v279, %v353
        %v355 = vrot.slane %v351, %v354
        %v357 = vunpack.c.l.s4 1966171168
        %v358 = vunpack.c.0.s8 %v357
        %v359 = vlaneseq
        %v360 = vshrl.u32 %v359, 7
        %v361 = vsub.s32 %v358, %v360
        %v362 = vrot.slane %v355, %v361
        %v364 = vunpack.c.l.s4 1966171168
        %v365 = vunpack.c.0.s8 %v364
        %v366 = vlaneseq
        %v367 = vshrl.u32 %v366, 7
        %v368 = vsub.s32 %v365, %v367
        %v369 = vrot.slane %v362, %v368
        %v371 = vmax.f32 %v302, %v369
        %372 = vst.msk [vmem:[#allocation3] sm:$0x1] %vm300, %v371
        // Predicated region
        $region45: #{tpu_custom_call.1} parent=31 // pred_check
          %p373 = pneg %p216
        $region46: #{tpu_custom_call.1} parent=31 // pred_check_branch
          %375 = sbr.rel (%p373) target = $region48
        $region47: #{tpu_custom_call.1} parent=31 // pred_region
          %v376 = vld [vmem:[#allocation2] sm:$0x1]
          %v377 = vmul.f32 %v376, 0.00390625
          %v378 = vld [vmem:[#allocation3] sm:$0x1]
          %v380 = vlaneseq
          %v381 = vshrl.u32 %v380, 7
          %v382 = vsub.s32 0, %v381
          %v383 = vrot.slane %v378, %v382
          %vm385 = vcmask 1040384
          %v386 = vsel %vm385, %v377, %v383
          %v387 = vld [vmem:[#allocation7] sm:$0xf]
          %v388 = vld [vmem:[%s2] sm:$0xf]
          %vm389 = vcmask 31744
          %v391 = vsel %vm389, %v386, 0
          %v394 = vsel %vm389, %v387, 0
          %396 = vmatprep.subr.mxu0 0.0
          %397 = vmatpush1.xpose.msra.mxu0 %v394
          %398 = vmatprep.subr.mxu0 0.0
          %399 = vmatpush1.xpose.msra.mxu0 0.0
          %400 = vmatprep.subr.mxu0 0.0
          %401 = vmatpush1.xpose.msra.mxu0 0.0
          %402 = vmatprep.subr.mxu0 0.0
          %403 = vmatpush1.xpose.msra.mxu0 0.0
          %404 = vmatprep.subr.mxu0 0.0
          %405 = vmatpush1.xpose.msra.mxu0 0.0
          %406 = vmatprep.subr.mxu0 0.0
          %407 = vmatpush1.xpose.msra.mxu0 0.0
          %408 = vmatprep.subr.mxu0 0.0
          %409 = vmatpush1.xpose.msra.mxu0 0.0
          %410 = vmatprep.subr.mxu0 0.0
          %411 = vmatpush1.xpose.msra.mxu0 0.0
          %412 = vmatprep.subr.mxu0 0.0
          %413 = vmatpush1.xpose.msra.mxu0 0.0
          %414 = vmatprep.subr.mxu0 0.0
          %415 = vmatpush1.xpose.msra.mxu0 0.0
          %416 = vmatprep.subr.mxu0 0.0
          %417 = vmatpush1.xpose.msra.mxu0 0.0
          %418 = vmatprep.subr.mxu0 0.0
          %419 = vmatpush1.xpose.msra.mxu0 0.0
          %420 = vmatprep.subr.mxu0 0.0
          %421 = vmatpush1.xpose.msra.mxu0 0.0
          %422 = vmatprep.subr.mxu0 0.0
          %423 = vmatpush1.xpose.msra.mxu0 0.0
          %424 = vmatprep.subr.mxu0 0.0
          %425 = vmatpush1.xpose.msra.mxu0 0.0
          %426 = vmatprep.subr.mxu0 0.0
          %427 = vmatpush1.xpose.msra.mxu0 0.0
          %428 = vmatprep.subr.mxu0 0.0
          %429 = vmatpush1.xpose.msra.mxu0 0.0
          %430 = vmatprep.subr.mxu0 0.0
          %431 = vmatpush1.xpose.msra.mxu0 0.0
          %432 = vmatprep.subr.mxu0 0.0
          %433 = vmatpush1.xpose.msra.mxu0 0.0
          %434 = vmatprep.subr.mxu0 0.0
          %435 = vmatpush1.xpose.msra.mxu0 0.0
          %436 = vmatprep.subr.mxu0 0.0
          %437 = vmatpush1.xpose.msra.mxu0 0.0
          %438 = vmatprep.subr.mxu0 0.0
          %439 = vmatpush1.xpose.msra.mxu0 0.0
          %440 = vmatprep.subr.mxu0 0.0
          %441 = vmatpush1.xpose.msra.mxu0 0.0
          %442 = vmatprep.subr.mxu0 0.0
          %443 = vmatpush1.xpose.msra.mxu0 0.0
          %444 = vmatprep.subr.mxu0 0.0
          %445 = vmatpush1.xpose.msra.mxu0 0.0
          %446 = vmatprep.subr.mxu0 0.0
          %447 = vmatpush1.xpose.msra.mxu0 0.0
          %448 = vmatprep.subr.mxu0 0.0
          %449 = vmatpush1.xpose.msra.mxu0 0.0
          %450 = vmatprep.subr.mxu0 0.0
          %451 = vmatpush1.xpose.msra.mxu0 0.0
          %452 = vmatprep.subr.mxu0 0.0
          %453 = vmatpush1.xpose.msra.mxu0 0.0
          %454 = vmatprep.subr.mxu0 0.0
          %455 = vmatpush1.xpose.msra.mxu0 0.0
          %456 = vmatprep.subr.mxu0 0.0
          %457 = vmatpush1.xpose.msra.mxu0 0.0
          %458 = vmatprep.subr.mxu0 0.0
          %459 = vmatpush1.xpose.msra.mxu0 0.0
          %460 = vmatprep.mubr.f32.mxu0 0.0
          %461 = vmatmul.mubr.f32.gmra.mrb[0].mxu0 %v391
          %v462 = vpop.f32.mrb[0].mxu0
          %v463 = vadd.f32 0.0, %v462
          %v464 = vpop.f32.mrb[0].mxu0
          %465 = vdwg.mxu0
          %v466 = vmax.f32 %v463, 0.0
          %v468 = vsel %vm389, %v466, 0
          %v471 = vsel %vm389, %v388, 0
          %473 = vmatprep.subr.mxu0 0.0
          %474 = vmatpush1.xpose.msra.mxu0 %v471
          %475 = vmatprep.subr.mxu0 0.0
          %476 = vmatpush1.xpose.msra.mxu0 0.0
          %477 = vmatprep.subr.mxu0 0.0
          %478 = vmatpush1.xpose.msra.mxu0 0.0
          %479 = vmatprep.subr.mxu0 0.0
          %480 = vmatpush1.xpose.msra.mxu0 0.0
          %481 = vmatprep.subr.mxu0 0.0
          %482 = vmatpush1.xpose.msra.mxu0 0.0
          %483 = vmatprep.subr.mxu0 0.0
          %484 = vmatpush1.xpose.msra.mxu0 0.0
          %485 = vmatprep.subr.mxu0 0.0
          %486 = vmatpush1.xpose.msra.mxu0 0.0
          %487 = vmatprep.subr.mxu0 0.0
          %488 = vmatpush1.xpose.msra.mxu0 0.0
          %489 = vmatprep.subr.mxu0 0.0
          %490 = vmatpush1.xpose.msra.mxu0 0.0
          %491 = vmatprep.subr.mxu0 0.0
          %492 = vmatpush1.xpose.msra.mxu0 0.0
          %493 = vmatprep.subr.mxu0 0.0
          %494 = vmatpush1.xpose.msra.mxu0 0.0
          %495 = vmatprep.subr.mxu0 0.0
          %496 = vmatpush1.xpose.msra.mxu0 0.0
          %497 = vmatprep.subr.mxu0 0.0
          %498 = vmatpush1.xpose.msra.mxu0 0.0
          %499 = vmatprep.subr.mxu0 0.0
          %500 = vmatpush1.xpose.msra.mxu0 0.0
          %501 = vmatprep.subr.mxu0 0.0
          %502 = vmatpush1.xpose.msra.mxu0 0.0
          %503 = vmatprep.subr.mxu0 0.0
          %504 = vmatpush1.xpose.msra.mxu0 0.0
          %505 = vmatprep.subr.mxu0 0.0
          %506 = vmatpush1.xpose.msra.mxu0 0.0
          %507 = vmatprep.subr.mxu0 0.0
          %508 = vmatpush1.xpose.msra.mxu0 0.0
          %509 = vmatprep.subr.mxu0 0.0
          %510 = vmatpush1.xpose.msra.mxu0 0.0
          %511 = vmatprep.subr.mxu0 0.0
          %512 = vmatpush1.xpose.msra.mxu0 0.0
          %513 = vmatprep.subr.mxu0 0.0
          %514 = vmatpush1.xpose.msra.mxu0 0.0
          %515 = vmatprep.subr.mxu0 0.0
          %516 = vmatpush1.xpose.msra.mxu0 0.0
          %517 = vmatprep.subr.mxu0 0.0
          %518 = vmatpush1.xpose.msra.mxu0 0.0
          %519 = vmatprep.subr.mxu0 0.0
          %520 = vmatpush1.xpose.msra.mxu0 0.0
          %521 = vmatprep.subr.mxu0 0.0
          %522 = vmatpush1.xpose.msra.mxu0 0.0
          %523 = vmatprep.subr.mxu0 0.0
          %524 = vmatpush1.xpose.msra.mxu0 0.0
          %525 = vmatprep.subr.mxu0 0.0
          %526 = vmatpush1.xpose.msra.mxu0 0.0
          %527 = vmatprep.subr.mxu0 0.0
          %528 = vmatpush1.xpose.msra.mxu0 0.0
          %529 = vmatprep.subr.mxu0 0.0
          %530 = vmatpush1.xpose.msra.mxu0 0.0
          %531 = vmatprep.subr.mxu0 0.0
          %532 = vmatpush1.xpose.msra.mxu0 0.0
          %533 = vmatprep.subr.mxu0 0.0
          %534 = vmatpush1.xpose.msra.mxu0 0.0
          %535 = vmatprep.subr.mxu0 0.0
          %536 = vmatpush1.xpose.msra.mxu0 0.0
          %537 = vmatprep.mubr.f32.mxu0 0.0
          %538 = vmatmul.mubr.f32.gmra.mrb[0].mxu0 %v468
          %v539 = vpop.f32.mrb[0].mxu0
          %v540 = vadd.f32 0.0, %v539
          %v541 = vpop.f32.mrb[0].mxu0
          %542 = vdwg.mxu0
          %v544 = vrot.slane %v540, 1
          %v546 = vadd.f32 %v540, %v544
          %v547 = vxor.u32 %v546, 2147483648
          %v548 = vmul.f32 %v547, 1.442695
          %v549 = vpow.pop %v548
          %v550 = vadd.f32 %v549, 1.0
          %v551 = vrcp.pop %v550
          %v552 = vmul.f32 1.0, %v551
          %553 = vst.msk [vmem:[%s214] sm:$0x1] %vm300, %v552
        $region48: #{tpu_custom_call.1} parent=31 // pred_fallthru
          _
        %s554 = sand.u32 %s111, 1
        %s555 = scalar_lea.sflag [#allocation6], %s554
        %s556 = sand.u32 %s111, 1
        %s557 = scalar_lea.vmem [#allocation9], %s556
        // Predicated region
        $region49: #{tpu_custom_call.1} parent=31 // pred_check
          %p558 = pneg %p121
        $region50: #{tpu_custom_call.1} parent=31 // pred_check_branch
          %560 = sbr.rel (%p558) target = $region52
        $region51: #{tpu_custom_call.1} parent=31 // pred_region
          %s562 = ssub.s32 16, 16
          %563 = vsyncadd %s555, %s562
          %s564 = smul.addr %s25, 16
          %s565 = scalar_lea.hbm %s3, %s564
          %s567 = sshll.u32 %s557, 4
          %s568 = int_to_ptr.vmem [resolvable:$true] %s567
          %570 = dma.vmem_to_hbm [thread:$0]  %s568, 16, %s565, %s555
        $region52: #{tpu_custom_call.1} parent=31 // pred_fallthru
          _
      $region32: #{tpu_custom_call.1} parent=5 // pred_fallthru
        _
      %p571 = scmp.le.s32.totalorder 2, %s16
      // Predicated region
      $region53: #{tpu_custom_call.1} parent=5 // pred_check
        %p572 = pneg %p571
      $region54: #{tpu_custom_call.1} parent=5 // pred_check_branch
        %574 = sbr.rel (%p572) target = $region56
      $region55: #{tpu_custom_call.1} parent=5 // pred_region
        %s575 = ssub.s32 %s16, 2
        // Predicated region
        $region57: #{tpu_custom_call.1} parent=55 // pred_check
          %p576 = pneg %p127
        $region58: #{tpu_custom_call.1} parent=55 // pred_check_branch
          %578 = sbr.rel (%p576) target = $region60
        $region59: #{tpu_custom_call.1} parent=55 // pred_region
          %s579 = sand.u32 %s112, 1
          %s580 = scalar_lea.sflag [#allocation6], %s579
          %s581 = sand.u32 %s112, 1
          %s582 = scalar_lea.vmem [#allocation9], %s581
          %583 = dma.done %s580, 16
        $region60: #{tpu_custom_call.1} parent=55 // pred_fallthru
          _
      $region56: #{tpu_custom_call.1} parent=5 // pred_fallthru
        _
    $region6: #{tpu_custom_call.1} parent=1 // loop_footer
      %s20 = sadd.s32 1, %s16
    $region7: #{tpu_custom_call.1} parent=1 // loop_footer_branch
      %15 = sbr.rel target = $region3
    $region8: #{tpu_custom_call.1} parent=1 // loop_exit
      _
    %584 = vsyncpa [#allocation5], 1
    %s585 = scalar_lea.sflag [#allocation5], 1
    %586 = vsyncpa %s585, 1
    %587 = vsyncpa [#allocation8], 1
    %588 = vsyncpa [#allocation6], 1
    %s589 = scalar_lea.sflag [#allocation6], 1
    %590 = vsyncpa %s589, 1

</llo_original>
